<compile_context>
chip_gen: v5e
topology: v5e:2x2
jax: 0.10.0
libtpu: 0.0.40
codegen_flags: <defaults>
</compile_context>

<pallas_src>
import jax
import jax.numpy as jnp
from jax import lax
from jax.experimental import pallas as pl
from jax.experimental.pallas import tpu as pltpu


def _round_up(x: int, m: int) -> int:
    return ((x + m - 1) // m) * m


def _cdiv(a: int, b: int) -> int:
    return (a + b - 1) // b


def _make_ssq_kernel(Bt, Ft, B, F, cpp, need_row_mask, need_col_mask):
    """Build the per-tile sum-of-squares kernel (static masking flags)."""

    def kernel(src_ref, trn_ref, ssq_ref):
        # Grid: (batch_tiles [parallel], P [parallel], feature_chunks [arbitrary]).
        j = pl.program_id(2)

        @pl.when(j == 0)
        def _init():
            ssq_ref[...] = jnp.zeros_like(ssq_ref)

        diff = src_ref[...].astype(jnp.float32) - trn_ref[...].astype(jnp.float32)

        if need_row_mask or need_col_mask:
            ok = None
            if need_row_mask:
                row = lax.broadcasted_iota(jnp.int32, (Bt, Ft), 0) + pl.program_id(0) * Bt
                ok = row < B
            if need_col_mask:
                # Logical (unclamped) chunk index — OOB tail chunks mask to 0.
                c = pl.program_id(1) * cpp + j
                col = lax.broadcasted_iota(jnp.int32, (Bt, Ft), 1) + c * Ft
                cm = col < F
                ok = cm if ok is None else (ok & cm)
            # where (not multiply): OOB garbage may decode to NaN/Inf.
            diff = jnp.where(ok, diff, 0.0)

        ssq_ref[...] += jnp.sum(diff * diff, axis=-1, keepdims=True)

    return kernel


def norm_loss(latent_source: jax.Array, latent_transferred: jax.Array,
              *, target_block_bytes: int = 4 * 1024 * 1024) -> jax.Array:
    assert latent_source.shape == latent_transferred.shape
    assert latent_source.ndim >= 2, "expected [B, ...] latents (module uses [B, N, D])"
    B = latent_source.shape[0]
    F = 1
    for d in latent_source.shape[1:]:
        F *= d

    # Lane-dense flattened layout; reshape of contiguous [B, N, D] is free.
    src = latent_source.reshape(B, F)
    trn = latent_transferred.reshape(B, F)

    itemsize = jnp.dtype(latent_source.dtype).itemsize
    sub_m = {4: 8, 2: 16, 1: 32}.get(itemsize, 8)  # dtype-aware sublane pack

    # ---- batch tile: full-dim block for small B, else minimize tail waste ----
    if B <= 32:
        Bt = B
    else:
        best = None
        for bt in range(sub_m, min(64, B) + 1, sub_m):
            waste = (-B) % bt
            key = (waste, -bt)           # least waste, then largest tile
            if best is None or key < best[0]:
                best = (key, bt)
        Bt = best[1]
    batch_tiles = _cdiv(B, Bt)
    need_row_mask = (B % Bt) != 0

    # ---- feature chunk: lane-dense, ~4 MiB per input block ----
    max_ft = max(128, (target_block_bytes // (Bt * itemsize)) // 128 * 128)
    Ft = min(_round_up(F, 128), max_ft)
    chunks_total = _cdiv(F, Ft)

    # ---- parallel feature split: keep both v7x TensorCores busy ----
    P = 2 if (batch_tiles == 1 and chunks_total >= 2) else 1
    cpp = _cdiv(chunks_total, P)
    exact_split = (P * cpp == chunks_total)
    need_col_mask = (F % Ft != 0) or (not exact_split)

    if exact_split:
        def in_map(i, p, j):
            return (i, p * cpp + j)
    else:
        def in_map(i, p, j):
            # Clamp the DMA index for the (at most P-1) wasted tail steps;
            # the kernel masks their contribution to 0 via the logical index.
            return (i, jnp.minimum(p * cpp + j, chunks_total - 1))

    kernel = _make_ssq_kernel(Bt, Ft, B, F, cpp, need_row_mask, need_col_mask)

    cost = pl.CostEstimate(
        flops=3 * B * F,
        transcendentals=0,
        bytes_accessed=2 * B * F * itemsize + B * P * 4,
    )

    ssq = pl.pallas_call(
        kernel,
        out_shape=jax.ShapeDtypeStruct((P, B, 1), jnp.float32),
        grid_spec=pltpu.PrefetchScalarGridSpec(
            num_scalar_prefetch=0,
            grid=(batch_tiles, P, cpp),
            in_specs=[
                pl.BlockSpec((Bt, Ft), in_map),
                pl.BlockSpec((Bt, Ft), in_map),
            ],
            # Same block index across the reduction axis -> resident
            # per-(batch-tile, split) accumulator; leading P dim squeezed.
            out_specs=pl.BlockSpec((None, Bt, 1), lambda i, p, j: (p, i, 0)),
        ),
        compiler_params=pltpu.CompilerParams(
            dimension_semantics=("parallel", "parallel", "arbitrary"),
            vmem_limit_bytes=32 * 1024 * 1024,
        ),
        cost_estimate=cost,
    )(src, trn)

    # Trailing reduce-over-splits + sqrt + mean in plain JAX (tiny).
    per_sample_ssq = jnp.sum(ssq[:, :, 0], axis=0)       # (B,)
    return jnp.sum(jnp.sqrt(per_sample_ssq)) / B


def _reference(latent_source, latent_transferred):
    diff = latent_source.astype(jnp.float32) - latent_transferred.astype(jnp.float32)
    axes = tuple(range(1, diff.ndim))
    per_sample = jnp.sqrt(jnp.sum(diff * diff, axis=axes))
    return jnp.sum(per_sample) / diff.shape[0]


if __name__ == "__main__":
    key = jax.random.PRNGKey(0)
    keys = jax.random.split(key, 8)

    # Case 1: small aligned shape, single chunk, Bt = B fast path.
    B, N, D = 2, 8, 32
    a1 = jax.random.normal(keys[0], (B, N, D), dtype=jnp.float32)
    b1 = jax.random.normal(keys[1], (B, N, D), dtype=jnp.float32)
    loss1 = norm_loss(a1, b1)
    jax.block_until_ready(loss1)
    ref1 = _reference(a1, b1)
    assert jnp.allclose(loss1, ref1, rtol=1e-5, atol=1e-5), (loss1, ref1)

    # Case 2: ragged feature dim -> in-kernel column masking (no padding).
    B2, N2, D2 = 3, 7, 50
    a2 = jax.random.normal(keys[2], (B2, N2, D2), dtype=jnp.float32)
    b2 = jax.random.normal(keys[3], (B2, N2, D2), dtype=jnp.float32)
    loss2 = norm_loss(a2, b2)
    jax.block_until_ready(loss2)
    ref2 = _reference(a2, b2)
    assert jnp.allclose(loss2, ref2, rtol=1e-5, atol=1e-5), (loss2, ref2)

    # Case 3: tiny block budget -> multi-chunk reduction + P=2 parallel split
    # (exercises the clamped tail step + column masking).
    B3, N3, D3 = 2, 16, 48     # F = 768, Ft = 256 -> 3 chunks, P = 2
    a3 = jax.random.normal(keys[4], (B3, N3, D3), dtype=jnp.float32)
    b3 = jax.random.normal(keys[5], (B3, N3, D3), dtype=jnp.float32)
    loss3 = norm_loss(a3, b3, target_block_bytes=2048)
    jax.block_until_ready(loss3)
    ref3 = _reference(a3, b3)
    assert jnp.allclose(loss3, ref3, rtol=1e-5, atol=1e-5), (loss3, ref3)

    # Case 4: B > 32 with ragged batch tail + bf16 (dtype-aware Bt, row mask).
    B4, N4, D4 = 37, 4, 32
    a4 = jax.random.normal(keys[6], (B4, N4, D4), dtype=jnp.bfloat16)
    b4 = jax.random.normal(keys[7], (B4, N4, D4), dtype=jnp.bfloat16)
    loss4 = norm_loss(a4, b4)
    jax.block_until_ready(loss4)
    ref4 = _reference(a4, b4)
    assert jnp.allclose(loss4, ref4, rtol=1e-4, atol=1e-4), (loss4, ref4)

    print("KERNEL_OK")
</pallas_src>

<mosaic_0001>
module attributes {stable_mosaic.version = 11 : i64} {
  func.func @kernel(%arg0: i32, %arg1: i32, %arg2: i32, %arg3: memref<2x256xf32, #tpu.memory_space<vmem>>, %arg4: memref<2x256xf32, #tpu.memory_space<vmem>>, %arg5: memref<1x2x1xf32, #tpu.memory_space<vmem>>) attributes {dimension_semantics = [#tpu.dimension_semantics<parallel>, #tpu.dimension_semantics<parallel>, #tpu.dimension_semantics<arbitrary>], iteration_bounds = array<i64: 1, 1, 1>, scalar_prefetch = 0 : i64, scratch_operands = 0 : i64, tpu.core_type = #tpu.core_type<tc>, window_params = [{transform_indices = @transform_0, window_bounds = array<i64: 2, 256>}, {transform_indices = @transform_1, window_bounds = array<i64: 2, 256>}, {transform_indices = @transform_2, window_bounds = array<i64: 1, 2, 1>}]} {
    %c0_i32 = arith.constant 0 : i32
    %0 = arith.cmpi eq, %arg2, %c0_i32 : i32
    %1 = arith.extui %0 : i1 to i32
    %c0_i32_0 = arith.constant 0 : i32
    %2 = arith.cmpi ne, %1, %c0_i32_0 : i32
    scf.if %2 {
      %cst_10 = arith.constant 0.000000e+00 : f32
      %15 = vector.broadcast %cst_10 : f32 to vector<2x1xf32>
      %c0_11 = arith.constant 0 : index
      %c0_12 = arith.constant 0 : index
      %c0_13 = arith.constant 0 : index
      %16 = vector.load %arg5[%c0_11, %c0_12, %c0_13] : memref<1x2x1xf32, #tpu.memory_space<vmem>>, vector<1x2x1xf32>
      %17 = vector.shape_cast %16 : vector<1x2x1xf32> to vector<2x1xf32>
      %18 = vector.shape_cast %15 : vector<2x1xf32> to vector<1x2x1xf32>
      tpu.vector_store %arg5[%c0_11, %c0_12, %c0_13], %18 {strides = array<i32>} : memref<1x2x1xf32, #tpu.memory_space<vmem>>, vector<1x2x1xf32>,
    } else {
    }
    %c0 = arith.constant 0 : index
    %c0_1 = arith.constant 0 : index
    %3 = vector.load %arg3[%c0, %c0_1] : memref<2x256xf32, #tpu.memory_space<vmem>>, vector<2x256xf32>
    %c0_2 = arith.constant 0 : index
    %c0_3 = arith.constant 0 : index
    %4 = vector.load %arg4[%c0_2, %c0_3] : memref<2x256xf32, #tpu.memory_space<vmem>>, vector<2x256xf32>
    %5 = arith.subf %3, %4 : vector<2x256xf32>
    %c0_4 = arith.constant 0 : index
    %c0_5 = arith.constant 0 : index
    %c0_6 = arith.constant 0 : index
    %6 = vector.load %arg5[%c0_4, %c0_5, %c0_6] : memref<1x2x1xf32, #tpu.memory_space<vmem>>, vector<1x2x1xf32>
    %7 = vector.shape_cast %6 : vector<1x2x1xf32> to vector<2x1xf32>
    %8 = arith.mulf %5, %5 : vector<2x256xf32>
    %cst = arith.constant dense<0.000000e+00> : vector<2xf32>
    %9 = vector.multi_reduction <add>, %8, %cst [1] : vector<2x256xf32> to vector<2xf32>
    %10 = vector.shape_cast %9 : vector<2xf32> to vector<2x1xf32>
    %11 = arith.addf %7, %10 : vector<2x1xf32>
    %c0_7 = arith.constant 0 : index
    %c0_8 = arith.constant 0 : index
    %c0_9 = arith.constant 0 : index
    %12 = vector.load %arg5[%c0_7, %c0_8, %c0_9] : memref<1x2x1xf32, #tpu.memory_space<vmem>>, vector<1x2x1xf32>
    %13 = vector.shape_cast %12 : vector<1x2x1xf32> to vector<2x1xf32>
    %14 = vector.shape_cast %11 : vector<2x1xf32> to vector<1x2x1xf32>
    tpu.vector_store %arg5[%c0_7, %c0_8, %c0_9], %14 {strides = array<i32>} : memref<1x2x1xf32, #tpu.memory_space<vmem>>, vector<1x2x1xf32>,
    return
  }
  func.func @transform_0(%arg0: i32, %arg1: i32, %arg2: i32) -> (i32, i32) {
    %c1_i32 = arith.constant 1 : i32
    %0 = arith.muli %arg1, %c1_i32 : i32
    %1 = arith.addi %0, %arg2 : i32
    %c0_i32 = arith.constant 0 : i32
    return %arg0, %1 : i32, i32
  }
  func.func @transform_1(%arg0: i32, %arg1: i32, %arg2: i32) -> (i32, i32) {
    %c1_i32 = arith.constant 1 : i32
    %0 = arith.muli %arg1, %c1_i32 : i32
    %1 = arith.addi %0, %arg2 : i32
    %c0_i32 = arith.constant 0 : i32
    return %arg0, %1 : i32, i32
  }
  func.func @transform_2(%arg0: i32, %arg1: i32, %arg2: i32) -> (i32, i32, i32) {
    %c0_i32 = arith.constant 0 : i32
    %c0_i32_0 = arith.constant 0 : i32
    return %arg1, %arg0, %c0_i32 : i32, i32, i32
  }
}

</mosaic_0001>

<llo_original>
// kernel: tpu_custom_call.1
$region0: #{tpu_custom_call.1}
  #allocation0 [shape = 'u32[]', space=smem, size = 0x4, offset = 0x4, fixed_abs, tag = 'smem constant byte address 0x4 - core index']
  #allocation1 [shape = 'u32[72,128]{1,0:T(1,128)}', space=vmem, size = 0x9000, scoped, tag = 'internal scratch']
  %s0 = inlined_call_operand.hbm [shape: f32[2,256], index: 0, kind: input, shape index: {}]
  %s1 = inlined_call_operand.hbm [shape: f32[2,256], index: 1, kind: input, shape index: {}]
  %s2 = inlined_call_operand.vmem [shape: f32[1,2,1], index: 2, kind: output, shape index: {}]
  %s3 = sld [smem:[#allocation0]]
  $region30: #{tpu_custom_call.1} parent=0
    _
  %s5 = ssub.s32 1, %s3
  %s6 = scalar_select 0, %s5, %s3
  $region1: #{tpu_custom_call.1} parent=0
    #allocation2 [shape = 'u8[2048]{0}', space=vmem, size = 0x800, scoped, tag = 'input window, operand 0, single buffered']
    #allocation3 [shape = 's32[1]{0}', space=sflag, size = 0x4, scoped, tag = 'scoped memory for tpu_custom_call.1']
    #allocation4 [shape = 'u8[2048]{0}', space=vmem, size = 0x800, scoped, tag = 'input window, operand 1, single buffered']
    #allocation5 [shape = 's32[1]{0}', space=sflag, size = 0x4, scoped, tag = 'scoped memory for tpu_custom_call.1']
    %7 = vsyncpa [#allocation3], 0
    %8 = vsyncpa [#allocation5], 0
    // Predicated region
    $region2: #{tpu_custom_call.1} parent=1 // pred_check
      _
    $region3: #{tpu_custom_call.1} parent=1 // pred_check_branch
      %10 = sbr.rel (0) target = $region5
    $region4: #{tpu_custom_call.1} parent=1 // pred_region
      %s11 = sadd.s32 0, 0
      %s12 = smul.u32 2, %s11
      %14 = vsyncadd [#allocation3], 0
      %s15 = smul.addr %s12, 2
      %s16 = scalar_lea.hbm %s0, %s15
      %s18 = sshll.u32 %s16, 4
      %s19 = int_to_ptr.hbm [resolvable:$true] %s18
      %s20 = sshll.u32 [#allocation2], 4
      %s21 = int_to_ptr.vmem [resolvable:$true] %s20
      %23 = dma.hbm_to_vmem [thread:$0]  %s19, 64, %s21, [#allocation3]
    $region5: #{tpu_custom_call.1} parent=1 // pred_fallthru
      _
    // Predicated region
    $region6: #{tpu_custom_call.1} parent=1 // pred_check
      _
    $region7: #{tpu_custom_call.1} parent=1 // pred_check_branch
      %25 = sbr.rel (0) target = $region9
    $region8: #{tpu_custom_call.1} parent=1 // pred_region
      %s26 = sadd.s32 0, 0
      %s27 = smul.u32 2, %s26
      %29 = vsyncadd [#allocation5], 0
      %s30 = smul.addr %s27, 2
      %s31 = scalar_lea.hbm %s1, %s30
      %s33 = sshll.u32 %s31, 4
      %s34 = int_to_ptr.hbm [resolvable:$true] %s33
      %s35 = sshll.u32 [#allocation4], 4
      %s36 = int_to_ptr.vmem [resolvable:$true] %s35
      %38 = dma.hbm_to_vmem [thread:$0]  %s34, 64, %s36, [#allocation5]
    $region9: #{tpu_custom_call.1} parent=1 // pred_fallthru
      _
    // Predicated region
    $region10: #{tpu_custom_call.1} parent=1 // pred_check
      _
    $region11: #{tpu_custom_call.1} parent=1 // pred_check_branch
      %40 = sbr.rel (0) target = $region13
    $region12: #{tpu_custom_call.1} parent=1 // pred_region
      %42 = dma.done [#allocation3], 64
    $region13: #{tpu_custom_call.1} parent=1 // pred_fallthru
      _
    // Predicated region
    $region14: #{tpu_custom_call.1} parent=1 // pred_check
      _
    $region15: #{tpu_custom_call.1} parent=1 // pred_check_branch
      %44 = sbr.rel (0) target = $region17
    $region16: #{tpu_custom_call.1} parent=1 // pred_region
      %46 = dma.done [#allocation5], 64
    $region17: #{tpu_custom_call.1} parent=1 // pred_fallthru
      _
    %s47 = sadd.s32 0, 0
    %s48 = smul.u32 2, %s47
    %s49 = sadd.s32 0, 0
    %s50 = smul.u32 2, %s49
    %p51 = scmp.eq.s32.totalorder 0, 0
    // Predicated region
    $region18: #{tpu_custom_call.1} parent=1 // pred_check
      %p52 = pneg %p51
    $region19: #{tpu_custom_call.1} parent=1 // pred_check_branch
      %54 = sbr.rel (%p52) target = $region21
    $region20: #{tpu_custom_call.1} parent=1 // pred_region
      %vm55 = vcmask 1024
      %56 = vst.msk [vmem:[%s2] sm:$0x3] %vm55, 0.0
    $region21: #{tpu_custom_call.1} parent=1 // pred_fallthru
      _
    %v57 = vld [vmem:[#allocation2] sm:$0xf]
    %v58 = vld [vmem:[#allocation4] sm:$0xf]
    %v59 = vsub.f32 %v57, %v58
    %v60 = vld [vmem:[%s2] sm:$0x3]
    %v61 = vmul.f32 %v59, %v59
    %63 = vst [vmem:[#allocation1] ss:$4 sm:$0xff] %v61
    %v64 = vld.sshfl [vmem:[#allocation1] sm:$0xff pattern:$0x73625140]
    %v65 = vld.sshfl [vmem:[#allocation1 + $0x8] sm:$0xff pattern:$0x73625140]
    %vm68 = vcmask 1041408
    %v69 = vsel %vm68, %v64, 0.0
    %v70 = vsel %vm68, %v65, 0.0
    %v71 = vadd.f32 %v69, %v70
    %72 = vadd.xlane.f32.xlu0 %v71
    %v73 = vpop.xlane.xlu0 %72
    %v74 = vadd.f32 %v60, %v73
    %vm75 = vcmask 1024
    %76 = vst.msk [vmem:[%s2] sm:$0x3] %vm75, %v74
    // Predicated region
    $region22: #{tpu_custom_call.1} parent=1 // pred_check
      _
    $region23: #{tpu_custom_call.1} parent=1 // pred_check_branch
      %78 = sbr.rel (0) target = $region25
    $region24: #{tpu_custom_call.1} parent=1 // pred_region
      _
    $region25: #{tpu_custom_call.1} parent=1 // pred_fallthru
      _
    // Predicated region
    $region26: #{tpu_custom_call.1} parent=1 // pred_check
      _
    $region27: #{tpu_custom_call.1} parent=1 // pred_check_branch
      %80 = sbr.rel (0) target = $region29
    $region28: #{tpu_custom_call.1} parent=1 // pred_region
      _
    $region29: #{tpu_custom_call.1} parent=1 // pred_fallthru
      _
    %81 = vsyncpa [#allocation3], 1
    %82 = vsyncpa [#allocation5], 1

</llo_original>
